<compile_context>
chip_gen: v6e
topology: v6e:2x2x1
jax: 0.10.0
libtpu: 0.0.40
codegen_flags: <defaults>
</compile_context>

<pallas_src>
import jax
import jax.numpy as jnp
from jax.experimental import pallas as pl
from jax.experimental.pallas import tpu as pltpu


def _attention_gate_kernel(g_ref, x_ref, wg_ref, wx_ref, b_ref, wpsi_ref,
                           bpsi_ref, o_ref):
    """Fused attention gate for one (C, T_pix) pixel tile of one batch element.

    g_ref    : (F_g,  TP)  gating-signal pixels (pixels on lanes)
    x_ref    : (F_l,  TP)  skip-connection pixels
    wg_ref   : (F_int, F_g)  conv+BN-folded W_g
    wx_ref   : (F_int, F_l)  conv+BN-folded W_x
    b_ref    : (F_int, 1)    folded bias (b_g + b_x), column vector
    wpsi_ref : (F_int, 1)    conv+BN-folded psi weights, column vector
    bpsi_ref : (1,)          folded psi bias (SMEM scalar)
    o_ref    : (F_l,  TP)    gated output x * psi
    """
    # Channel-contraction matmuls on the MXU, f32 accumulation, pixels lane-dense.
    g1 = jnp.dot(wg_ref[...], g_ref[...],
                 preferred_element_type=jnp.float32)          # (F_int, TP)
    x1 = jnp.dot(wx_ref[...], x_ref[...],
                 preferred_element_type=jnp.float32)          # (F_int, TP)
    a = jnp.maximum(g1 + x1 + b_ref[...], 0.0)                # ReLU, f32

    # F_int -> 1 projection as a VPU multiply + sublane reduction (avoids a
    # degenerate 1-row MXU matmul).
    p = jnp.sum(a * wpsi_ref[...], axis=0, keepdims=True) + bpsi_ref[0]  # (1, TP)

    # Sigmoid: exp + approximate reciprocal both go to the EUP (free VALU slots).
    psi = pl.reciprocal(1.0 + jnp.exp(-p), approx=True)       # (1, TP)

    o_ref[...] = (x_ref[...].astype(jnp.float32) * psi).astype(o_ref.dtype)


def _round_up(a, b):
    return ((a + b - 1) // b) * b


def attention_block_forward(g, x,
                            w_g, b_g, gamma_g, beta_g, rm_g, rv_g,
                            w_x, b_x, gamma_x, beta_x, rm_x, rv_x,
                            w_psi, b_psi, gamma_p, beta_p, rm_p, rv_p,
                            eps=1e-5):
    """Equivalent of Attention_block.forward(g, x) (NCHW in / NCHW out).

    # TODO(synk): BatchNorm2d is evaluated with running statistics (eval mode);
    # training-mode batch statistics would need an extra cross-pixel reduction.
    """
    N, F_g, H, W = g.shape
    F_l = x.shape[1]
    F_int = w_g.shape[0]
    HW = H * W

    # NCHW kept as-is: (N, C, H, W) -> (N, C, H*W) is a free, contiguous view.
    g3 = g.reshape(N, F_g, HW)
    x3 = x.reshape(N, F_l, HW)

    f32 = jnp.float32

    # ---- fold eval-mode BatchNorm into the 1x1 conv weights / biases ----
    sg = (gamma_g.astype(f32)) / jnp.sqrt(rv_g.astype(f32) + eps)       # (F_int,)
    wg_mat = (w_g.reshape(F_int, F_g).astype(f32) * sg[:, None]).astype(g.dtype)
    bg = (b_g.astype(f32) - rm_g.astype(f32)) * sg + beta_g.astype(f32)

    sx = (gamma_x.astype(f32)) / jnp.sqrt(rv_x.astype(f32) + eps)       # (F_int,)
    wx_mat = (w_x.reshape(F_int, F_l).astype(f32) * sx[:, None]).astype(x.dtype)
    bx = (b_x.astype(f32) - rm_x.astype(f32)) * sx + beta_x.astype(f32)

    b_sum = (bg + bx).reshape(F_int, 1)                                  # f32

    sp = (gamma_p.astype(f32)) / jnp.sqrt(rv_p.astype(f32) + eps)        # (1,)
    wpsi_col = (w_psi.reshape(F_int).astype(f32) * sp[0]).reshape(F_int, 1)
    bpsi = ((b_psi.astype(f32) - rm_p.astype(f32)) * sp + beta_p.astype(f32))  # (1,)

    # ---- pixel-tile size from a VMEM budget (double-buffered g/x/out blocks) ----
    itemsize = max(jnp.dtype(g.dtype).itemsize, jnp.dtype(x.dtype).itemsize)
    vmem_block_budget = 12 * 1024 * 1024        # fits every generation's scoped VMEM
    tp_cap = vmem_block_budget // (2 * (F_g + 2 * F_l) * itemsize)
    tp_cap = max(128, (tp_cap // 128) * 128)    # lane-dense: multiple of 128
    TP = min(_round_up(HW, 128), tp_cap)

    # Ensure >= 2 grid steps when possible so "parallel" axes can shard across
    # the two TensorCores on v7x (no effect on v5e/v6e).
    if N * pl.cdiv(HW, TP) < 2 and HW > 128:
        TP = _round_up(pl.cdiv(HW, 2), 128)

    grid = (N, pl.cdiv(HW, TP))                 # ragged last pixel tile, no padding

    out3 = pl.pallas_call(
        _attention_gate_kernel,
        out_shape=jax.ShapeDtypeStruct((N, F_l, HW), x.dtype),
        grid=grid,
        in_specs=[
            pl.BlockSpec((None, F_g, TP), lambda n, t: (n, 0, t)),
            pl.BlockSpec((None, F_l, TP), lambda n, t: (n, 0, t)),
            pl.BlockSpec((F_int, F_g), lambda n, t: (0, 0)),
            pl.BlockSpec((F_int, F_l), lambda n, t: (0, 0)),
            pl.BlockSpec((F_int, 1), lambda n, t: (0, 0)),
            pl.BlockSpec((F_int, 1), lambda n, t: (0, 0)),
            pl.BlockSpec(memory_space=pltpu.MemorySpace.SMEM),
        ],
        out_specs=pl.BlockSpec((None, F_l, TP), lambda n, t: (n, 0, t)),
        compiler_params=pltpu.CompilerParams(
            dimension_semantics=("parallel", "parallel"),
            vmem_limit_bytes=48 * 1024 * 1024),   # below v7x's 64 MiB physical
    )(g3, x3, wg_mat, wx_mat, b_sum, wpsi_col, bpsi)

    return out3.reshape(N, F_l, H, W)             # free reshape, still NCHW


def attention_block_reference(g, x,
                              w_g, b_g, gamma_g, beta_g, rm_g, rv_g,
                              w_x, b_x, gamma_x, beta_x, rm_x, rv_x,
                              w_psi, b_psi, gamma_p, beta_p, rm_p, rv_p,
                              eps=1e-5):
    """Pure-JAX reference (same eval-mode semantics) for verification."""
    def conv1x1_bn(inp, w, b, gamma, beta, rm, rv):
        y = jnp.einsum('nchw,oc->nohw', inp, w[:, :, 0, 0])
        y = y + b[None, :, None, None]
        y = (y - rm[None, :, None, None]) / jnp.sqrt(rv[None, :, None, None] + eps)
        return y * gamma[None, :, None, None] + beta[None, :, None, None]

    g1 = conv1x1_bn(g, w_g, b_g, gamma_g, beta_g, rm_g, rv_g)
    x1 = conv1x1_bn(x, w_x, b_x, gamma_x, beta_x, rm_x, rv_x)
    a = jnp.maximum(g1 + x1, 0.0)
    p = conv1x1_bn(a, w_psi, b_psi, gamma_p, beta_p, rm_p, rv_p)
    psi = jax.nn.sigmoid(p)
    return x * psi


if __name__ == "__main__":
    key = jax.random.PRNGKey(0)
    N, H, W = 2, 16, 16
    F_g, F_l, F_int = 8, 8, 4   # Attention_block(F_g, F_l, F_int)

    keys = jax.random.split(key, 15)
    g = jax.random.normal(keys[0], (N, F_g, H, W), jnp.float32)
    x = jax.random.normal(keys[1], (N, F_l, H, W), jnp.float32)

    # Deterministic synthetic parameters (PyTorch layout: OIHW conv weights).
    w_g = 0.2 * jax.random.normal(keys[2], (F_int, F_g, 1, 1), jnp.float32)
    b_g = 0.1 * jax.random.normal(keys[3], (F_int,), jnp.float32)
    gamma_g = 1.0 + 0.1 * jax.random.normal(keys[4], (F_int,), jnp.float32)
    beta_g = 0.1 * jax.random.normal(keys[5], (F_int,), jnp.float32)
    rm_g = 0.1 * jax.random.normal(keys[6], (F_int,), jnp.float32)
    rv_g = 1.0 + 0.1 * jax.random.uniform(keys[7], (F_int,), jnp.float32)

    w_x = 0.2 * jax.random.normal(keys[8], (F_int, F_l, 1, 1), jnp.float32)
    b_x = 0.1 * jax.random.normal(keys[9], (F_int,), jnp.float32)
    gamma_x = 1.0 + 0.1 * jax.random.normal(keys[10], (F_int,), jnp.float32)
    beta_x = 0.1 * jax.random.normal(keys[11], (F_int,), jnp.float32)
    rm_x = 0.1 * jax.random.normal(keys[12], (F_int,), jnp.float32)
    rv_x = 1.0 + 0.1 * jax.random.uniform(keys[13], (F_int,), jnp.float32)

    kp = jax.random.split(keys[14], 6)
    w_psi = 0.2 * jax.random.normal(kp[0], (1, F_int, 1, 1), jnp.float32)
    b_psi = 0.1 * jax.random.normal(kp[1], (1,), jnp.float32)
    gamma_p = 1.0 + 0.1 * jax.random.normal(kp[2], (1,), jnp.float32)
    beta_p = 0.1 * jax.random.normal(kp[3], (1,), jnp.float32)
    rm_p = 0.1 * jax.random.normal(kp[4], (1,), jnp.float32)
    rv_p = 1.0 + 0.1 * jax.random.uniform(kp[5], (1,), jnp.float32)

    args = (g, x,
            w_g, b_g, gamma_g, beta_g, rm_g, rv_g,
            w_x, b_x, gamma_x, beta_x, rm_x, rv_x,
            w_psi, b_psi, gamma_p, beta_p, rm_p, rv_p)

    out = attention_block_forward(*args)
    out = jax.block_until_ready(out)

    ref = attention_block_reference(*args)
    assert out.shape == (N, F_l, H, W), out.shape
    # Both kernel and reference run their f32 matmuls through the MXU at default
    # (bf16-pass) precision; BN-folding order differences leave a few-1e-3
    # discrepancy, so use a tolerance that still catches real layout/index bugs.
    max_err = float(jnp.max(jnp.abs(out - ref)))
    assert jnp.allclose(out, ref, atol=1e-2, rtol=1e-2), max_err

    print("KERNEL_OK")
</pallas_src>

<mosaic_0001>
module attributes {stable_mosaic.version = 11 : i64} {
  func.func @_attention_gate_kernel(%arg0: i32, %arg1: i32, %arg2: memref<1x8x256xf32, #tpu.memory_space<vmem>>, %arg3: memref<1x8x256xf32, #tpu.memory_space<vmem>>, %arg4: memref<4x8xf32, #tpu.memory_space<vmem>>, %arg5: memref<4x8xf32, #tpu.memory_space<vmem>>, %arg6: memref<4x1xf32, #tpu.memory_space<vmem>>, %arg7: memref<4x1xf32, #tpu.memory_space<vmem>>, %arg8: memref<1xf32, #tpu.memory_space<smem>>, %arg9: memref<1x8x256xf32, #tpu.memory_space<vmem>>) attributes {dimension_semantics = [#tpu.dimension_semantics<parallel>, #tpu.dimension_semantics<parallel>], iteration_bounds = array<i64: 2, 1>, scalar_prefetch = 0 : i64, scratch_operands = 0 : i64, tpu.core_type = #tpu.core_type<tc>, window_params = [{transform_indices = @transform_0, window_bounds = array<i64: 1, 8, 256>}, {transform_indices = @transform_1, window_bounds = array<i64: 1, 8, 256>}, {pipeline_mode = #tpu.pipeline_mode<synchronous>, transform_indices = @transform_2, window_bounds = array<i64: 4, 8>}, {pipeline_mode = #tpu.pipeline_mode<synchronous>, transform_indices = @transform_3, window_bounds = array<i64: 4, 8>}, {pipeline_mode = #tpu.pipeline_mode<synchronous>, transform_indices = @transform_4, window_bounds = array<i64: 4, 1>}, {pipeline_mode = #tpu.pipeline_mode<synchronous>, transform_indices = @transform_5, window_bounds = array<i64: 4, 1>}, {transform_indices = @transform_6, window_bounds = array<i64: 1>}, {transform_indices = @transform_7, window_bounds = array<i64: 1, 8, 256>}]} {
    %c0 = arith.constant 0 : index
    %c0_0 = arith.constant 0 : index
    %0 = vector.load %arg4[%c0, %c0_0] : memref<4x8xf32, #tpu.memory_space<vmem>>, vector<4x8xf32>
    %c0_1 = arith.constant 0 : index
    %c0_2 = arith.constant 0 : index
    %c0_3 = arith.constant 0 : index
    %1 = vector.load %arg2[%c0_1, %c0_2, %c0_3] : memref<1x8x256xf32, #tpu.memory_space<vmem>>, vector<1x8x256xf32>
    %2 = vector.shape_cast %1 : vector<1x8x256xf32> to vector<8x256xf32>
    %cst = arith.constant dense<0.000000e+00> : vector<4x256xf32>
    %3 = tpu.matmul %0, %2, %cst {dimension_numbers = #tpu.dot_dimension_numbers<[1], [0], [0], [1], [0, 0, 1, 1], [], []>} : vector<4x8xf32>, vector<8x256xf32>, vector<4x256xf32> -> vector<4x256xf32>
    %c0_4 = arith.constant 0 : index
    %c0_5 = arith.constant 0 : index
    %4 = vector.load %arg5[%c0_4, %c0_5] : memref<4x8xf32, #tpu.memory_space<vmem>>, vector<4x8xf32>
    %c0_6 = arith.constant 0 : index
    %c0_7 = arith.constant 0 : index
    %c0_8 = arith.constant 0 : index
    %5 = vector.load %arg3[%c0_6, %c0_7, %c0_8] : memref<1x8x256xf32, #tpu.memory_space<vmem>>, vector<1x8x256xf32>
    %6 = vector.shape_cast %5 : vector<1x8x256xf32> to vector<8x256xf32>
    %cst_9 = arith.constant dense<0.000000e+00> : vector<4x256xf32>
    %7 = tpu.matmul %4, %6, %cst_9 {dimension_numbers = #tpu.dot_dimension_numbers<[1], [0], [0], [1], [0, 0, 1, 1], [], []>} : vector<4x8xf32>, vector<8x256xf32>, vector<4x256xf32> -> vector<4x256xf32>
    %8 = arith.addf %3, %7 : vector<4x256xf32>
    %c0_10 = arith.constant 0 : index
    %c0_11 = arith.constant 0 : index
    %9 = vector.load %arg6[%c0_10, %c0_11] : memref<4x1xf32, #tpu.memory_space<vmem>>, vector<4x1xf32>
    %10 = vector.broadcast %9 : vector<4x1xf32> to vector<4x256xf32>
    %11 = arith.addf %8, %10 : vector<4x256xf32>
    %cst_12 = arith.constant 0.000000e+00 : f32
    %12 = vector.broadcast %cst_12 : f32 to vector<4x256xf32>
    %13 = arith.maximumf %11, %12 : vector<4x256xf32>
    %c0_13 = arith.constant 0 : index
    %c0_14 = arith.constant 0 : index
    %14 = vector.load %arg7[%c0_13, %c0_14] : memref<4x1xf32, #tpu.memory_space<vmem>>, vector<4x1xf32>
    %15 = vector.broadcast %14 : vector<4x1xf32> to vector<4x256xf32>
    %16 = arith.mulf %13, %15 : vector<4x256xf32>
    %cst_15 = arith.constant dense<0.000000e+00> : vector<256xf32>
    %17 = vector.multi_reduction <add>, %16, %cst_15 [0] : vector<4x256xf32> to vector<256xf32>
    %18 = vector.shape_cast %17 : vector<256xf32> to vector<1x256xf32>
    %c0_16 = arith.constant 0 : index
    %19 = memref.load %arg8[%c0_16] : memref<1xf32, #tpu.memory_space<smem>>
    %20 = vector.broadcast %19 : f32 to vector<1x256xf32>
    %21 = arith.addf %18, %20 : vector<1x256xf32>
    %cst_17 = arith.constant 0.000000e+00 : f32
    %22 = vector.broadcast %cst_17 : f32 to vector<1x256xf32>
    %23 = arith.subf %22, %21 : vector<1x256xf32>
    %24 = math.exp %23 : vector<1x256xf32>
    %cst_18 = arith.constant 1.000000e+00 : f32
    %25 = vector.broadcast %cst_18 : f32 to vector<1x256xf32>
    %26 = arith.addf %25, %24 : vector<1x256xf32>
    %27 = tpu.reciprocal %26 {approx = true} : vector<1x256xf32> -> vector<1x256xf32>
    %c0_19 = arith.constant 0 : index
    %c0_20 = arith.constant 0 : index
    %c0_21 = arith.constant 0 : index
    %28 = vector.load %arg3[%c0_19, %c0_20, %c0_21] : memref<1x8x256xf32, #tpu.memory_space<vmem>>, vector<1x8x256xf32>
    %29 = vector.shape_cast %28 : vector<1x8x256xf32> to vector<8x256xf32>
    %30 = vector.broadcast %27 : vector<1x256xf32> to vector<8x256xf32>
    %31 = arith.mulf %29, %30 : vector<8x256xf32>
    %c0_22 = arith.constant 0 : index
    %c0_23 = arith.constant 0 : index
    %c0_24 = arith.constant 0 : index
    %32 = vector.load %arg9[%c0_22, %c0_23, %c0_24] : memref<1x8x256xf32, #tpu.memory_space<vmem>>, vector<1x8x256xf32>
    %33 = vector.shape_cast %32 : vector<1x8x256xf32> to vector<8x256xf32>
    %34 = vector.shape_cast %31 : vector<8x256xf32> to vector<1x8x256xf32>
    tpu.vector_store %arg9[%c0_22, %c0_23, %c0_24], %34 {strides = array<i32>} : memref<1x8x256xf32, #tpu.memory_space<vmem>>, vector<1x8x256xf32>,
    return
  }
  func.func @transform_0(%arg0: i32, %arg1: i32) -> (i32, i32, i32) {
    %c0_i32 = arith.constant 0 : i32
    %c0_i32_0 = arith.constant 0 : i32
    return %arg0, %c0_i32, %arg1 : i32, i32, i32
  }
  func.func @transform_1(%arg0: i32, %arg1: i32) -> (i32, i32, i32) {
    %c0_i32 = arith.constant 0 : i32
    %c0_i32_0 = arith.constant 0 : i32
    return %arg0, %c0_i32, %arg1 : i32, i32, i32
  }
  func.func @transform_2(%arg0: i32, %arg1: i32) -> (i32, i32) {
    %c0_i32 = arith.constant 0 : i32
    %c0_i32_0 = arith.constant 0 : i32
    %c0_i32_1 = arith.constant 0 : i32
    return %c0_i32, %c0_i32_0 : i32, i32
  }
  func.func @transform_3(%arg0: i32, %arg1: i32) -> (i32, i32) {
    %c0_i32 = arith.constant 0 : i32
    %c0_i32_0 = arith.constant 0 : i32
    %c0_i32_1 = arith.constant 0 : i32
    return %c0_i32, %c0_i32_0 : i32, i32
  }
  func.func @transform_4(%arg0: i32, %arg1: i32) -> (i32, i32) {
    %c0_i32 = arith.constant 0 : i32
    %c0_i32_0 = arith.constant 0 : i32
    %c0_i32_1 = arith.constant 0 : i32
    return %c0_i32, %c0_i32_0 : i32, i32
  }
  func.func @transform_5(%arg0: i32, %arg1: i32) -> (i32, i32) {
    %c0_i32 = arith.constant 0 : i32
    %c0_i32_0 = arith.constant 0 : i32
    %c0_i32_1 = arith.constant 0 : i32
    return %c0_i32, %c0_i32_0 : i32, i32
  }
  func.func @transform_6(%arg0: i32, %arg1: i32) -> i32 {
    %c0_i32 = arith.constant 0 : i32
    %c0_i32_0 = arith.constant 0 : i32
    return %c0_i32 : i32
  }
  func.func @transform_7(%arg0: i32, %arg1: i32) -> (i32, i32, i32) {
    %c0_i32 = arith.constant 0 : i32
    %c0_i32_0 = arith.constant 0 : i32
    return %arg0, %c0_i32, %arg1 : i32, i32, i32
  }
}

</mosaic_0001>

<llo_original>
// kernel: tpu_custom_call.1
$region0: #{tpu_custom_call.1}
  #allocation0 [shape = 'u32[]', space=smem, size = 0x4, offset = 0x4, fixed_abs, tag = 'smem constant byte address 0x4 - core index']
  #allocation1 [shape = 'u32[144,128]{1,0:T(1,128)}', space=vmem, size = 0x12000, scoped, tag = 'internal scratch']
  #allocation2 [shape = 'f32[1]{0:T(128)S(6)}', space=smem, size = 0x200, scoped, tag = 'scoped memory for tpu_custom_call.1']
  %s0 = inlined_call_operand.hbm [shape: f32[2,8,256], index: 0, kind: input, shape index: {}]
  %s1 = inlined_call_operand.hbm [shape: f32[2,8,256], index: 1, kind: input, shape index: {}]
  %s2 = inlined_call_operand.vmem [shape: f32[4,8], index: 2, kind: input, shape index: {}]
  %s3 = inlined_call_operand.vmem [shape: f32[4,8], index: 3, kind: input, shape index: {}]
  %s4 = inlined_call_operand.vmem [shape: f32[4,1], index: 4, kind: input, shape index: {}]
  %s5 = inlined_call_operand.vmem [shape: f32[4,1], index: 5, kind: input, shape index: {}]
  %s6 = inlined_call_operand.<no memory space> [shape: f32[1], index: 6, kind: input, shape index: {}]
  %s7 = inlined_call_operand.hbm [shape: f32[2,8,256], index: 7, kind: output, shape index: {}]
  %s8 = sld [smem:[#allocation0]]
  $region69: #{tpu_custom_call.1} parent=0
    _
  %s10 = ssub.s32 1, %s8
  %s11 = scalar_select 0, %s10, %s8
  %12 = sst [smem:[#allocation2]] %s6
  $region1: #{tpu_custom_call.1} parent=0
    #allocation3 [shape = 'u8[16384]{0}', space=vmem, size = 0x4000, scoped, tag = 'input window, operand 0']
    #allocation4 [shape = 's32[2]{0}', space=sflag, size = 0x8, scoped, tag = 'scoped memory for tpu_custom_call.1']
    #allocation5 [shape = 's32[2]{0}', space=sflag, size = 0x8, scoped, tag = 'scoped memory for tpu_custom_call.1']
    #allocation6 [shape = 'u8[16384]{0}', space=vmem, size = 0x4000, scoped, tag = 'input window, operand 1']
    #allocation7 [shape = 's32[2]{0}', space=sflag, size = 0x8, scoped, tag = 'scoped memory for tpu_custom_call.1']
    #allocation8 [shape = 'u8[16384]{0}', space=vmem, size = 0x4000, scoped, tag = 'output window, operand 0']
    %13 = vsyncpa [#allocation4], 0
    %s14 = scalar_lea.sflag [#allocation4], 1
    %15 = vsyncpa %s14, 0
    %16 = vsyncpa [#allocation7], 0
    %s17 = scalar_lea.sflag [#allocation7], 1
    %18 = vsyncpa %s17, 0
    %19 = vsyncpa [#allocation5], 0
    %s20 = scalar_lea.sflag [#allocation5], 1
    %21 = vsyncpa %s20, 0
    loop: start=0, step=1, limit=4
    $region2: #{tpu_custom_call.1} parent=1 // loop_pre_header
      _
    $region3: #{tpu_custom_call.1} parent=1 // loop_header
      %s23 = sphi 0, %s27
      %p24 = scmp.ge.s32.totalorder %s23, 4
      %s30 = sphi 0, %s42
      %s31 = sphi 0, %s38
      %s32 = sphi 0, %s30
      %s33 = sphi 0, %s31
      %s34 = sphi 0, %s32
      %s35 = sphi 0, %s33
      %s47 = sphi 0, %s49
      %s50 = sphi 0, %s47
      %s51 = sphi 0, %s50
      %s67 = sphi 0, %s51
      %s75 = sphi 0, %s77
      %s78 = sphi 0, %s75
      %s79 = sphi 0, %s78
      %s95 = sphi 0, %s79
      %s99 = sphi 0, %s99
      %s101 = sphi 0, %s99
      %s102 = sphi 0, %s101
      %s116 = sphi 0, %s102
      %s120 = sphi 0, %s120
      %s122 = sphi 0, %s120
      %s123 = sphi 0, %s122
      %s137 = sphi 0, %s123
      %s141 = sphi 0, %s141
      %s143 = sphi 0, %s141
      %s144 = sphi 0, %s143
      %s158 = sphi 0, %s144
      %s162 = sphi 0, %s162
      %s164 = sphi 0, %s162
      %s165 = sphi 0, %s164
      %s179 = sphi 0, %s165
      %s183 = sphi 0, %s183
      %s185 = sphi 0, %s183
      %s186 = sphi 0, %s185
      %s200 = sphi 0, %s186
      %s208 = sphi 0, %s210
      %s211 = sphi 0, %s208
      %s212 = sphi 0, %s211
      %s228 = sphi 0, %s212
    $region4: #{tpu_custom_call.1} parent=1 // loop_header_branch
      %26 = sbr.rel (%p24) target = $region8
    $region5: #{tpu_custom_call.1} parent=1 // loop_body
      %s28 = ssub.s32 %s23, 1
      %s29 = ssub.s32 %s23, 2
      %s36 = sadd.s32 1, %s31
      %p37 = scmp.ge.s32.totalorder %s36, 1
      %s38 = scalar_select %p37, 0, %s36
      %s39 = sadd.s32 1, %s30
      %s40 = scalar_select %p37, %s39, %s30
      %p41 = scmp.ge.s32.totalorder %s40, 2
      %s42 = scalar_select %p41, 0, %s40
      %s43 = ssub.s32 %s30, %s42
      %s44 = ssub.s32 %s31, %s38
      %s45 = sor.u32 %s43, %s44
      %p46 = scmp.eq.s32.totalorder %s45, 0
      %s48 = sadd.s32 %s47, 1
      %s49 = scalar_select %p46, %s47, %s48
      %p52 = pneg %p46
      %p53 = scmp.eq.s32.totalorder %s23, 1
      %p54 = por %p52, %p53
      %p55 = scmp.ne.s32.totalorder %s47, %s50
      %p56 = scmp.eq.s32.totalorder %s23, 0
      %p57 = por %p55, %p56
      %p58 = scmp.ne.s32.totalorder %s47, %s50
      %p59 = scmp.eq.s32.totalorder %s28, 1
      %p60 = por %p58, %p59
      %p61 = scmp.ne.s32.totalorder %s50, %s51
      %p62 = scmp.eq.s32.totalorder %s28, 0
      %p63 = por %p61, %p62
      %p64 = scmp.ne.s32.totalorder %s50, %s51
      %p65 = scmp.eq.s32.totalorder %s29, 1
      %p66 = por %p64, %p65
      %p68 = scmp.ne.s32.totalorder %s51, %s67
      %p69 = scmp.eq.s32.totalorder %s29, 0
      %p70 = por %p68, %p69
      %s71 = ssub.s32 %s30, %s42
      %s72 = ssub.s32 %s31, %s38
      %s73 = sor.u32 %s71, %s72
      %p74 = scmp.eq.s32.totalorder %s73, 0
      %s76 = sadd.s32 %s75, 1
      %s77 = scalar_select %p74, %s75, %s76
      %p80 = pneg %p74
      %p81 = scmp.eq.s32.totalorder %s23, 1
      %p82 = por %p80, %p81
      %p83 = scmp.ne.s32.totalorder %s75, %s78
      %p84 = scmp.eq.s32.totalorder %s23, 0
      %p85 = por %p83, %p84
      %p86 = scmp.ne.s32.totalorder %s75, %s78
      %p87 = scmp.eq.s32.totalorder %s28, 1
      %p88 = por %p86, %p87
      %p89 = scmp.ne.s32.totalorder %s78, %s79
      %p90 = scmp.eq.s32.totalorder %s28, 0
      %p91 = por %p89, %p90
      %p92 = scmp.ne.s32.totalorder %s78, %s79
      %p93 = scmp.eq.s32.totalorder %s29, 1
      %p94 = por %p92, %p93
      %p96 = scmp.ne.s32.totalorder %s79, %s95
      %p97 = scmp.eq.s32.totalorder %s29, 0
      %p98 = por %p96, %p97
      %s100 = sadd.s32 %s99, 1
      %p103 = scmp.eq.s32.totalorder %s23, 1
      %p104 = scmp.ne.s32.totalorder %s99, %s101
      %p105 = scmp.eq.s32.totalorder %s23, 0
      %p106 = por %p104, %p105
      %p107 = scmp.ne.s32.totalorder %s99, %s101
      %p108 = scmp.eq.s32.totalorder %s28, 1
      %p109 = por %p107, %p108
      %p110 = scmp.ne.s32.totalorder %s101, %s102
      %p111 = scmp.eq.s32.totalorder %s28, 0
      %p112 = por %p110, %p111
      %p113 = scmp.ne.s32.totalorder %s101, %s102
      %p114 = scmp.eq.s32.totalorder %s29, 1
      %p115 = por %p113, %p114
      %p117 = scmp.ne.s32.totalorder %s102, %s116
      %p118 = scmp.eq.s32.totalorder %s29, 0
      %p119 = por %p117, %p118
      %s121 = sadd.s32 %s120, 1
      %p124 = scmp.eq.s32.totalorder %s23, 1
      %p125 = scmp.ne.s32.totalorder %s120, %s122
      %p126 = scmp.eq.s32.totalorder %s23, 0
      %p127 = por %p125, %p126
      %p128 = scmp.ne.s32.totalorder %s120, %s122
      %p129 = scmp.eq.s32.totalorder %s28, 1
      %p130 = por %p128, %p129
      %p131 = scmp.ne.s32.totalorder %s122, %s123
      %p132 = scmp.eq.s32.totalorder %s28, 0
      %p133 = por %p131, %p132
      %p134 = scmp.ne.s32.totalorder %s122, %s123
      %p135 = scmp.eq.s32.totalorder %s29, 1
      %p136 = por %p134, %p135
      %p138 = scmp.ne.s32.totalorder %s123, %s137
      %p139 = scmp.eq.s32.totalorder %s29, 0
      %p140 = por %p138, %p139
      %s142 = sadd.s32 %s141, 1
      %p145 = scmp.eq.s32.totalorder %s23, 1
      %p146 = scmp.ne.s32.totalorder %s141, %s143
      %p147 = scmp.eq.s32.totalorder %s23, 0
      %p148 = por %p146, %p147
      %p149 = scmp.ne.s32.totalorder %s141, %s143
      %p150 = scmp.eq.s32.totalorder %s28, 1
      %p151 = por %p149, %p150
      %p152 = scmp.ne.s32.totalorder %s143, %s144
      %p153 = scmp.eq.s32.totalorder %s28, 0
      %p154 = por %p152, %p153
      %p155 = scmp.ne.s32.totalorder %s143, %s144
      %p156 = scmp.eq.s32.totalorder %s29, 1
      %p157 = por %p155, %p156
      %p159 = scmp.ne.s32.totalorder %s144, %s158
      %p160 = scmp.eq.s32.totalorder %s29, 0
      %p161 = por %p159, %p160
      %s163 = sadd.s32 %s162, 1
      %p166 = scmp.eq.s32.totalorder %s23, 1
      %p167 = scmp.ne.s32.totalorder %s162, %s164
      %p168 = scmp.eq.s32.totalorder %s23, 0
      %p169 = por %p167, %p168
      %p170 = scmp.ne.s32.totalorder %s162, %s164
      %p171 = scmp.eq.s32.totalorder %s28, 1
      %p172 = por %p170, %p171
      %p173 = scmp.ne.s32.totalorder %s164, %s165
      %p174 = scmp.eq.s32.totalorder %s28, 0
      %p175 = por %p173, %p174
      %p176 = scmp.ne.s32.totalorder %s164, %s165
      %p177 = scmp.eq.s32.totalorder %s29, 1
      %p178 = por %p176, %p177
      %p180 = scmp.ne.s32.totalorder %s165, %s179
      %p181 = scmp.eq.s32.totalorder %s29, 0
      %p182 = por %p180, %p181
      %s184 = sadd.s32 %s183, 1
      %p187 = scmp.eq.s32.totalorder %s23, 1
      %p188 = scmp.ne.s32.totalorder %s183, %s185
      %p189 = scmp.eq.s32.totalorder %s23, 0
      %p190 = por %p188, %p189
      %p191 = scmp.ne.s32.totalorder %s183, %s185
      %p192 = scmp.eq.s32.totalorder %s28, 1
      %p193 = por %p191, %p192
      %p194 = scmp.ne.s32.totalorder %s185, %s186
      %p195 = scmp.eq.s32.totalorder %s28, 0
      %p196 = por %p194, %p195
      %p197 = scmp.ne.s32.totalorder %s185, %s186
      %p198 = scmp.eq.s32.totalorder %s29, 1
      %p199 = por %p197, %p198
      %p201 = scmp.ne.s32.totalorder %s186, %s200
      %p202 = scmp.eq.s32.totalorder %s29, 0
      %p203 = por %p201, %p202
      %s204 = ssub.s32 %s30, %s42
      %s205 = ssub.s32 %s31, %s38
      %s206 = sor.u32 %s204, %s205
      %p207 = scmp.eq.s32.totalorder %s206, 0
      %s209 = sadd.s32 %s208, 1
      %s210 = scalar_select %p207, %s208, %s209
      %p213 = pneg %p207
      %p214 = scmp.eq.s32.totalorder %s23, 1
      %p215 = por %p213, %p214
      %p216 = scmp.ne.s32.totalorder %s208, %s211
      %p217 = scmp.eq.s32.totalorder %s23, 0
      %p218 = por %p216, %p217
      %p219 = scmp.ne.s32.totalorder %s208, %s211
      %p220 = scmp.eq.s32.totalorder %s28, 1
      %p221 = por %p219, %p220
      %p222 = scmp.ne.s32.totalorder %s211, %s212
      %p223 = scmp.eq.s32.totalorder %s28, 0
      %p224 = por %p222, %p223
      %p225 = scmp.ne.s32.totalorder %s211, %s212
      %p226 = scmp.eq.s32.totalorder %s29, 1
      %p227 = por %p225, %p226
      %p229 = scmp.ne.s32.totalorder %s212, %s228
      %p230 = scmp.eq.s32.totalorder %s29, 0
      %p231 = por %p229, %p230
      %p232 = scmp.le.s32.totalorder 1, %s23
      %p233 = scmp.lt.s32.totalorder %s23, 3
      %p234 = pnand %p232, %p233
      %p235 = pneg %p234
      // Predicated region
      $region9: #{tpu_custom_call.1} parent=5 // pred_check
        _
      $region10: #{tpu_custom_call.1} parent=5 // pred_check_branch
        %237 = sbr.rel (%p234) target = $region12
      $region11: #{tpu_custom_call.1} parent=5 // pred_region
        %s238 = ssub.s32 %s23, 1
        // Predicated region
        $region13: #{tpu_custom_call.1} parent=11 // pred_check
          %p239 = pneg %p112
        $region14: #{tpu_custom_call.1} parent=11 // pred_check_branch
          %241 = sbr.rel (%p239) target = $region16
        $region15: #{tpu_custom_call.1} parent=11 // pred_region
          _
        $region16: #{tpu_custom_call.1} parent=11 // pred_fallthru
          _
        // Predicated region
        $region17: #{tpu_custom_call.1} parent=11 // pred_check
          %p242 = pneg %p133
        $region18: #{tpu_custom_call.1} parent=11 // pred_check_branch
          %244 = sbr.rel (%p242) target = $region20
        $region19: #{tpu_custom_call.1} parent=11 // pred_region
          _
        $region20: #{tpu_custom_call.1} parent=11 // pred_fallthru
          _
        // Predicated region
        $region21: #{tpu_custom_call.1} parent=11 // pred_check
          %p245 = pneg %p154
        $region22: #{tpu_custom_call.1} parent=11 // pred_check_branch
          %247 = sbr.rel (%p245) target = $region24
        $region23: #{tpu_custom_call.1} parent=11 // pred_region
          _
        $region24: #{tpu_custom_call.1} parent=11 // pred_fallthru
          _
        // Predicated region
        $region25: #{tpu_custom_call.1} parent=11 // pred_check
          %p248 = pneg %p175
        $region26: #{tpu_custom_call.1} parent=11 // pred_check_branch
          %250 = sbr.rel (%p248) target = $region28
        $region27: #{tpu_custom_call.1} parent=11 // pred_region
          _
        $region28: #{tpu_custom_call.1} parent=11 // pred_fallthru
          _
        // Predicated region
        $region29: #{tpu_custom_call.1} parent=11 // pred_check
          %p251 = pneg %p196
        $region30: #{tpu_custom_call.1} parent=11 // pred_check_branch
          %253 = sbr.rel (%p251) target = $region32
        $region31: #{tpu_custom_call.1} parent=11 // pred_region
          _
        $region32: #{tpu_custom_call.1} parent=11 // pred_fallthru
          _
      $region12: #{tpu_custom_call.1} parent=5 // pred_fallthru
        _
      %p254 = scmp.lt.s32.totalorder %s23, 2
      // Predicated region
      $region33: #{tpu_custom_call.1} parent=5 // pred_check
        %p255 = pneg %p254
      $region34: #{tpu_custom_call.1} parent=5 // pred_check_branch
        %257 = sbr.rel (%p255) target = $region36
      $region35: #{tpu_custom_call.1} parent=5 // pred_region
        // Predicated region
        $region37: #{tpu_custom_call.1} parent=35 // pred_check
          %p258 = pneg %p57
        $region38: #{tpu_custom_call.1} parent=35 // pred_check_branch
          %260 = sbr.rel (%p258) target = $region40
        $region39: #{tpu_custom_call.1} parent=35 // pred_region
          %s261 = sand.u32 %s47, 1
          %s262 = scalar_lea.sflag [#allocation4], %s261
          %s263 = sand.u32 %s47, 1
          %s264 = smul.addr %s263, 16
          %s265 = scalar_lea.vmem [#allocation3], %s264
          %s266 = smul.u32 2, %s31
          %s268 = ssub.s32 256, 256
          %269 = vsyncadd %s262, %s268
          %s270 = smul.addr %s30, 2
          %s271 = sadd.s32 %s266, %s270
          %s272 = smul.addr %s271, 128
          %s273 = scalar_lea.hbm %s0, %s272
          %s275 = sshll.u32 %s265, 4
          %s276 = int_to_ptr.vmem [resolvable:$true] %s275
          %278 = dma.hbm_to_vmem [thread:$0]  %s273, 256, %s276, %s262
        $region40: #{tpu_custom_call.1} parent=35 // pred_fallthru
          _
        // Predicated region
        $region41: #{tpu_custom_call.1} parent=35 // pred_check
          %p279 = pneg %p85
        $region42: #{tpu_custom_call.1} parent=35 // pred_check_branch
          %281 = sbr.rel (%p279) target = $region44
        $region43: #{tpu_custom_call.1} parent=35 // pred_region
          %s282 = sand.u32 %s75, 1
          %s283 = scalar_lea.sflag [#allocation7], %s282
          %s284 = sand.u32 %s75, 1
          %s285 = smul.addr %s284, 16
          %s286 = scalar_lea.vmem [#allocation6], %s285
          %s287 = smul.u32 2, %s31
          %s289 = ssub.s32 256, 256
          %290 = vsyncadd %s283, %s289
          %s291 = smul.addr %s30, 2
          %s292 = sadd.s32 %s287, %s291
          %s293 = smul.addr %s292, 128
          %s294 = scalar_lea.hbm %s1, %s293
          %s296 = sshll.u32 %s286, 4
          %s297 = int_to_ptr.vmem [resolvable:$true] %s296
          %299 = dma.hbm_to_vmem [thread:$0]  %s294, 256, %s297, %s283
        $region44: #{tpu_custom_call.1} parent=35 // pred_fallthru
          _
      $region36: #{tpu_custom_call.1} parent=5 // pred_fallthru
        _
      %p300 = scmp.le.s32.totalorder 1, %s23
      %p301 = scmp.lt.s32.totalorder %s23, 3
      %p302 = pnand %p300, %p301
      %p303 = pneg %p302
      // Predicated region
      $region45: #{tpu_custom_call.1} parent=5 // pred_check
        _
      $region46: #{tpu_custom_call.1} parent=5 // pred_check_branch
        %305 = sbr.rel (%p302) target = $region48
      $region47: #{tpu_custom_call.1} parent=5 // pred_region
        %s306 = ssub.s32 %s23, 1
        %s307 = sand.u32 %s50, 1
        %s308 = scalar_lea.sflag [#allocation4], %s307
        %s309 = sand.u32 %s50, 1
        %s310 = smul.addr %s309, 16
        %s311 = scalar_lea.vmem [#allocation3], %s310
        // Predicated region
        $region49: #{tpu_custom_call.1} parent=47 // pred_check
          %p312 = pneg %p63
        $region50: #{tpu_custom_call.1} parent=47 // pred_check_branch
          %314 = sbr.rel (%p312) target = $region52
        $region51: #{tpu_custom_call.1} parent=47 // pred_region
          %315 = dma.done %s308, 256
        $region52: #{tpu_custom_call.1} parent=47 // pred_fallthru
          _
        %s316 = sand.u32 %s78, 1
        %s317 = scalar_lea.sflag [#allocation7], %s316
        %s318 = sand.u32 %s78, 1
        %s319 = smul.addr %s318, 16
        %s320 = scalar_lea.vmem [#allocation6], %s319
        // Predicated region
        $region53: #{tpu_custom_call.1} parent=47 // pred_check
          %p321 = pneg %p91
        $region54: #{tpu_custom_call.1} parent=47 // pred_check_branch
          %323 = sbr.rel (%p321) target = $region56
        $region55: #{tpu_custom_call.1} parent=47 // pred_region
          %324 = dma.done %s317, 256
        $region56: #{tpu_custom_call.1} parent=47 // pred_fallthru
          _
        %s325 = sand.u32 %s50, 1
        %s326 = scalar_lea.sflag [#allocation4], %s325
        %s327 = sand.u32 %s50, 1
        %s328 = smul.addr %s327, 16
        %s329 = scalar_lea.vmem [#allocation3], %s328
        %p330 = pneg %p63
        %p331 = pneg %p60
        %s332 = sand.u32 %s78, 1
        %s333 = scalar_lea.sflag [#allocation7], %s332
        %s334 = sand.u32 %s78, 1
        %s335 = smul.addr %s334, 16
        %s336 = scalar_lea.vmem [#allocation6], %s335
        %p337 = pneg %p91
        %p338 = pneg %p88
        %p339 = pneg %p112
        %p340 = pneg %p109
        %p341 = pneg %p133
        %p342 = pneg %p130
        %p343 = pneg %p154
        %p344 = pneg %p151
        %p345 = pneg %p175
        %p346 = pneg %p172
        %p347 = pneg %p196
        %p348 = pneg %p193
        %p349 = pneg %p224
        %p350 = pneg %p221
        %s351 = sand.u32 %s211, 1
        %s352 = scalar_lea.sflag [#allocation5], %s351
        %s353 = sand.u32 %s211, 1
        %s354 = smul.addr %s353, 16
        %s355 = scalar_lea.vmem [#allocation8], %s354
        %s356 = smul.u32 2, %s33
        %s357 = smul.u32 2, %s33
        %s358 = smul.u32 2, %s33
        %v359 = vld [vmem:[%s2] sm:$0xf]
        %v360 = vld [vmem:[%s311] sm:$0xff]
        %v361 = vld [vmem:[%s311 + $0x8] sm:$0xff]
        %v362 = vld [vmem:[%s3] sm:$0xf]
        %v363 = vld [vmem:[%s320] sm:$0xff]
        %v364 = vld [vmem:[%s320 + $0x8] sm:$0xff]
        %vm365 = vcmask 64512
        %v367 = vsel %vm365, %v362, 0
        %369 = vmatprep.subr.mxu0 0.0
        %370 = vmatpush1.msra.mxu0 0.0
        %371 = vmatprep.subr.mxu0 0.0
        %372 = vmatpush1.msra.mxu0 0.0
        %373 = vmatprep.subr.mxu0 0.0
        %374 = vmatpush1.msra.mxu0 0.0
        %375 = vmatprep.subr.mxu0 0.0
        %376 = vmatpush1.msra.mxu0 0.0
        %377 = vmatprep.subr.mxu0 0.0
        %378 = vmatpush1.msra.mxu0 0.0
        %379 = vmatprep.subr.mxu0 0.0
        %380 = vmatpush1.msra.mxu0 0.0
        %381 = vmatprep.subr.mxu0 0.0
        %382 = vmatpush1.msra.mxu0 0.0
        %383 = vmatprep.subr.mxu0 0.0
        %384 = vmatpush1.msra.mxu0 0.0
        %385 = vmatprep.subr.mxu0 0.0
        %386 = vmatpush1.msra.mxu0 0.0
        %387 = vmatprep.subr.mxu0 0.0
        %388 = vmatpush1.msra.mxu0 0.0
        %389 = vmatprep.subr.mxu0 0.0
        %390 = vmatpush1.msra.mxu0 0.0
        %391 = vmatprep.subr.mxu0 0.0
        %392 = vmatpush1.msra.mxu0 0.0
        %393 = vmatprep.subr.mxu0 0.0
        %394 = vmatpush1.msra.mxu0 0.0
        %395 = vmatprep.subr.mxu0 0.0
        %396 = vmatpush1.msra.mxu0 0.0
        %397 = vmatprep.subr.mxu0 0.0
        %398 = vmatpush1.msra.mxu0 0.0
        %399 = vmatprep.subr.mxu0 %v364
        %400 = vmatpush1.msra.mxu0 %v363
        %401 = vmatprep.subr.mxu0 0.0
        %402 = vmatpush2.msra.mxu0 0.0
        %403 = vmatprep.subr.mxu0 0.0
        %404 = vmatpush2.msra.mxu0 0.0
        %405 = vmatprep.subr.mxu0 0.0
        %406 = vmatpush2.msra.mxu0 0.0
        %407 = vmatprep.subr.mxu0 0.0
        %408 = vmatpush2.msra.mxu0 0.0
        %409 = vmatprep.subr.mxu0 0.0
        %410 = vmatpush2.msra.mxu0 0.0
        %411 = vmatprep.subr.mxu0 0.0
        %412 = vmatpush2.msra.mxu0 0.0
        %413 = vmatprep.subr.mxu0 0.0
        %414 = vmatpush2.msra.mxu0 0.0
        %415 = vmatprep.subr.mxu0 0.0
        %416 = vmatpush2.msra.mxu0 0.0
        %417 = vmatprep.subr.mxu0 0.0
        %418 = vmatpush2.msra.mxu0 0.0
        %419 = vmatprep.subr.mxu0 0.0
        %420 = vmatpush2.msra.mxu0 0.0
        %421 = vmatprep.subr.mxu0 0.0
        %422 = vmatpush2.msra.mxu0 0.0
        %423 = vmatprep.subr.mxu0 0.0
        %424 = vmatpush2.msra.mxu0 0.0
        %425 = vmatprep.subr.mxu0 0.0
        %426 = vmatpush2.msra.mxu0 0.0
        %427 = vmatprep.subr.mxu0 0.0
        %428 = vmatpush2.msra.mxu0 0.0
        %429 = vmatprep.subr.mxu0 0.0
        %430 = vmatpush2.msra.mxu0 0.0
        %431 = vmatprep.subr.mxu0 0.0
        %432 = vmatpush2.msra.mxu0 0.0
        %433 = vmatprep.mubr.f32.mxu0 0.0
        %434 = vmatmul.mubr.f32.gmra.mxu0 %v367
        %v435 = vpop.f32.mrf.mxu0
        %v436 = vadd.f32 0.0, %v435
        %v437 = vpop.f32.mrf.mxu0
        %v438 = vadd.f32 0.0, %v437
        %439 = vdwg.mxu0
        %v441 = vsel %vm365, %v359, 0
        %443 = vmatprep.subr.mxu0 0.0
        %444 = vmatpush1.msra.mxu0 0.0
        %445 = vmatprep.subr.mxu0 0.0
        %446 = vmatpush1.msra.mxu0 0.0
        %447 = vmatprep.subr.mxu0 0.0
        %448 = vmatpush1.msra.mxu0 0.0
        %449 = vmatprep.subr.mxu0 0.0
        %450 = vmatpush1.msra.mxu0 0.0
        %451 = vmatprep.subr.mxu0 0.0
        %452 = vmatpush1.msra.mxu0 0.0
        %453 = vmatprep.subr.mxu0 0.0
        %454 = vmatpush1.msra.mxu0 0.0
        %455 = vmatprep.subr.mxu0 0.0
        %456 = vmatpush1.msra.mxu0 0.0
        %457 = vmatprep.subr.mxu0 0.0
        %458 = vmatpush1.msra.mxu0 0.0
        %459 = vmatprep.subr.mxu0 0.0
        %460 = vmatpush1.msra.mxu0 0.0
        %461 = vmatprep.subr.mxu0 0.0
        %462 = vmatpush1.msra.mxu0 0.0
        %463 = vmatprep.subr.mxu0 0.0
        %464 = vmatpush1.msra.mxu0 0.0
        %465 = vmatprep.subr.mxu0 0.0
        %466 = vmatpush1.msra.mxu0 0.0
        %467 = vmatprep.subr.mxu0 0.0
        %468 = vmatpush1.msra.mxu0 0.0
        %469 = vmatprep.subr.mxu0 0.0
        %470 = vmatpush1.msra.mxu0 0.0
        %471 = vmatprep.subr.mxu0 0.0
        %472 = vmatpush1.msra.mxu0 0.0
        %473 = vmatprep.subr.mxu0 %v361
        %474 = vmatpush1.msra.mxu0 %v360
        %475 = vmatprep.subr.mxu0 0.0
        %476 = vmatpush2.msra.mxu0 0.0
        %477 = vmatprep.subr.mxu0 0.0
        %478 = vmatpush2.msra.mxu0 0.0
        %479 = vmatprep.subr.mxu0 0.0
        %480 = vmatpush2.msra.mxu0 0.0
        %481 = vmatprep.subr.mxu0 0.0
        %482 = vmatpush2.msra.mxu0 0.0
        %483 = vmatprep.subr.mxu0 0.0
        %484 = vmatpush2.msra.mxu0 0.0
        %485 = vmatprep.subr.mxu0 0.0
        %486 = vmatpush2.msra.mxu0 0.0
        %487 = vmatprep.subr.mxu0 0.0
        %488 = vmatpush2.msra.mxu0 0.0
        %489 = vmatprep.subr.mxu0 0.0
        %490 = vmatpush2.msra.mxu0 0.0
        %491 = vmatprep.subr.mxu0 0.0
        %492 = vmatpush2.msra.mxu0 0.0
        %493 = vmatprep.subr.mxu0 0.0
        %494 = vmatpush2.msra.mxu0 0.0
        %495 = vmatprep.subr.mxu0 0.0
        %496 = vmatpush2.msra.mxu0 0.0
        %497 = vmatprep.subr.mxu0 0.0
        %498 = vmatpush2.msra.mxu0 0.0
        %499 = vmatprep.subr.mxu0 0.0
        %500 = vmatpush2.msra.mxu0 0.0
        %501 = vmatprep.subr.mxu0 0.0
        %502 = vmatpush2.msra.mxu0 0.0
        %503 = vmatprep.subr.mxu0 0.0
        %504 = vmatpush2.msra.mxu0 0.0
        %505 = vmatprep.subr.mxu0 0.0
        %506 = vmatpush2.msra.mxu0 0.0
        %507 = vmatprep.mubr.f32.mxu0 0.0
        %508 = vmatmul.mubr.f32.gmra.mxu0 %v441
        %v509 = vpop.f32.mrf.mxu0
        %v510 = vadd.f32 %v436, %v509
        %v511 = vpop.f32.mrf.mxu0
        %v512 = vadd.f32 %v438, %v511
        %513 = vdwg.mxu0
        %v514 = vld [vmem:[%s4] sm:$0xf]
        %516 = vset.pattern.permute.xlu0 0
        %517 = vperm.xlu0 %516, %v514
        %v518 = vpop.permute.xlu0 %517
        %v520 = vadd.f32 %v510, %v518
        %v521 = vadd.f32 %v512, %v518
        %v522 = vmax.f32 %v520, 0.0
        %v523 = vmax.f32 %v521, 0.0
        %v524 = vld [vmem:[%s5] sm:$0xf]
        %526 = vset.pattern.permute.xlu0 0
        %527 = vperm.xlu0 %526, %v524
        %v528 = vpop.permute.xlu0 %527
        %v530 = vmul.f32 %v522, %v528
        %v531 = vmul.f32 %v523, %v528
        %vm532 = vcmask 1043456
        %v533 = vsel %vm532, %v530, 0.0
        %v534 = vrot.slane %v533, 4
        %v535 = vadd.f32 %v533, %v534
        %v536 = vrot.slane %v535, 2
        %v537 = vadd.f32 %v535, %v536
        %v538 = vrot.slane %v537, 1
        %v539 = vadd.f32 %v537, %v538
        %v540 = vsel %vm532, %v531, 0.0
        %v541 = vrot.slane %v540, 4
        %v542 = vadd.f32 %v540, %v541
        %v543 = vrot.slane %v542, 2
        %v544 = vadd.f32 %v542, %v543
        %v545 = vrot.slane %v544, 1
        %v546 = vadd.f32 %v544, %v545
        %s547 = sld [smem:[#allocation2]]
        %v548 = vstv %s547
        %v549 = vadd.f32 %v539, %v548
        %v550 = vadd.f32 %v546, %v548
        %v551 = vsub.f32 0.0, %v549
        %v552 = vsub.f32 0.0, %v550
        %v553 = vmul.f32 %v551, 1.442695
        %v554 = vpow.pop %v553
        %v555 = vmul.f32 %v552, 1.442695
        %v556 = vpow.pop %v555
        %v557 = vadd.f32 %v554, 1.0
        %v558 = vadd.f32 %v556, 1.0
        %v559 = vrcp.pop %v557
        %v560 = vrcp.pop %v558
        %v561 = vmul.f32 %v363, %v559
        %v562 = vmul.f32 %v364, %v560
        %563 = vst [vmem:[%s355] sm:$0xff] %v561
        %564 = vst [vmem:[%s355 + $0x8] sm:$0xff] %v562
        %s565 = sand.u32 %s211, 1
        %s566 = scalar_lea.sflag [#allocation5], %s565
        %s567 = sand.u32 %s211, 1
        %s568 = smul.addr %s567, 16
        %s569 = scalar_lea.vmem [#allocation8], %s568
        // Predicated region
        $region57: #{tpu_custom_call.1} parent=47 // pred_check
          %p570 = pneg %p221
        $region58: #{tpu_custom_call.1} parent=47 // pred_check_branch
          %572 = sbr.rel (%p570) target = $region60
        $region59: #{tpu_custom_call.1} parent=47 // pred_region
          %s573 = smul.u32 2, %s33
          %s575 = ssub.s32 256, 256
          %576 = vsyncadd %s566, %s575
          %s577 = smul.addr %s32, 2
          %s578 = sadd.s32 %s573, %s577
          %s579 = smul.addr %s578, 128
          %s580 = scalar_lea.hbm %s7, %s579
          %s582 = sshll.u32 %s569, 4
          %s583 = int_to_ptr.vmem [resolvable:$true] %s582
          %585 = dma.vmem_to_hbm [thread:$0]  %s583, 256, %s580, %s566
        $region60: #{tpu_custom_call.1} parent=47 // pred_fallthru
          _
      $region48: #{tpu_custom_call.1} parent=5 // pred_fallthru
        _
      %p586 = scmp.le.s32.totalorder 2, %s23
      // Predicated region
      $region61: #{tpu_custom_call.1} parent=5 // pred_check
        %p587 = pneg %p586
      $region62: #{tpu_custom_call.1} parent=5 // pred_check_branch
        %589 = sbr.rel (%p587) target = $region64
      $region63: #{tpu_custom_call.1} parent=5 // pred_region
        %s590 = ssub.s32 %s23, 2
        // Predicated region
        $region65: #{tpu_custom_call.1} parent=63 // pred_check
          %p591 = pneg %p227
        $region66: #{tpu_custom_call.1} parent=63 // pred_check_branch
          %593 = sbr.rel (%p591) target = $region68
        $region67: #{tpu_custom_call.1} parent=63 // pred_region
          %s594 = sand.u32 %s212, 1
          %s595 = scalar_lea.sflag [#allocation5], %s594
          %s596 = sand.u32 %s212, 1
          %s597 = smul.addr %s596, 16
          %s598 = scalar_lea.vmem [#allocation8], %s597
          %599 = dma.done %s595, 256
        $region68: #{tpu_custom_call.1} parent=63 // pred_fallthru
          _
      $region64: #{tpu_custom_call.1} parent=5 // pred_fallthru
        _
    $region6: #{tpu_custom_call.1} parent=1 // loop_footer
      %s27 = sadd.s32 1, %s23
    $region7: #{tpu_custom_call.1} parent=1 // loop_footer_branch
      %22 = sbr.rel target = $region3
    $region8: #{tpu_custom_call.1} parent=1 // loop_exit
      _
    %600 = vsyncpa [#allocation4], 1
    %s601 = scalar_lea.sflag [#allocation4], 1
    %602 = vsyncpa %s601, 1
    %603 = vsyncpa [#allocation7], 1
    %s604 = scalar_lea.sflag [#allocation7], 1
    %605 = vsyncpa %s604, 1
    %606 = vsyncpa [#allocation5], 1
    %s607 = scalar_lea.sflag [#allocation5], 1
    %608 = vsyncpa %s607, 1

</llo_original>
